<compile_context>
chip_gen: v7x
topology: tpu7x:2x2x1
jax: 0.10.0
libtpu: 0.0.40
codegen_flags: <defaults>
</compile_context>

<pallas_src>
import functools

import jax
import jax.numpy as jnp
from jax.experimental import pallas as pl
from jax.experimental.pallas import tpu as pltpu

LANE = 128
SUBLANE = 8


def _round_up(n, mult):
    return ((n + mult - 1) // mult) * mult


def _pick_tile_b(B, per_row_bytes, resident_bytes, vmem_budget):
    """Largest legal batch tile that fits the VMEM budget.

    Legal = divides B and is a multiple of 8 (or equals B).  When B >= 16 we
    force >= 2 tiles so both v7x TensorCores get work (costs one extra ~0.35us
    grid step on 1-TC v5e/v6e, i.e. nothing).
    """
    avail = vmem_budget - resident_bytes - (2 << 20)  # slack for internal scratch
    cap = max(SUBLANE, avail // max(per_row_bytes, 1))
    if B >= 16:
        cap = min(cap, B // 2)
    cap = min(cap, B)
    for t in range(int(cap), 0, -1):
        if B % t == 0 and (t % SUBLANE == 0 or t == B):
            return t
    # Fallback: one tile of the whole batch (always layout-legal).  A batch
    # size with no 8-aligned divisor can blow past the VMEM estimate above;
    # prefer 8-divisible batch sizes.
    return B


def _resblock_stream_kernel(x_ref, w1_ref, w2_ref, b_ref, wo_ref, bo_ref,
                            o_ref, acc_ref, *, m):
    """One grid step = one residual block applied to one batch tile.

    Grid = (batch_tiles, n_blocks); batch axis "parallel", block axis
    "arbitrary" (sequential carry in acc_ref).

    x_ref : (tile_b, m)         unpadded input tile (resident across blk)
    w1_ref: (1, m_pad, m_pad)   this block's first Linear, (in, out) layout
    w2_ref: (1, m_pad, m_pad)   this block's second Linear, (in, out) layout
    b_ref : (1, 2, m_pad)       [b1; b2] packed sublane-dense
    wo_ref: (m_pad, out_pad)    output-layer weight (resident whole grid)
    bo_ref: (1, out_pad)
    o_ref : (tile_b, out_pad)   lane-dense padded output (written on last blk)
    acc_ref: VMEM (tile_b, m_pad) f32 running activation

    Zero-padded weights/biases + tanh(0)=0 keep padded lanes exactly 0 through
    every residual add, so no masking is needed anywhere.
    """
    blk = pl.program_id(1)
    m_pad = acc_ref.shape[1]

    @pl.when(blk == 0)
    def _init():
        if m == m_pad:
            acc_ref[...] = x_ref[...].astype(jnp.float32)
        else:
            # Zero-pad the feature dim to a lane multiple inside VMEM
            # (no wrapper-side jnp.pad pass over the whole input in HBM).
            acc_ref[...] = jnp.zeros_like(acc_ref)
            acc_ref[:, 0:m] = x_ref[...].astype(jnp.float32)

    x = acc_ref[...]                       # (tile_b, m_pad) f32
    w1 = w1_ref[0]                         # (m_pad, m_pad)
    w2 = w2_ref[0]
    b = b_ref[0]                           # (2, m_pad) f32
    b1 = b[0:1, :]
    b2 = b[1:2, :]

    # Matmuls run in the weight dtype (bf16 on v6e/v7x for ~2x MXU rate) with
    # f32 accumulation; tanh and the residual add stay in f32.
    h = jnp.tanh(
        jnp.dot(x.astype(w1.dtype), w1, preferred_element_type=jnp.float32) + b1)
    y = jnp.tanh(
        jnp.dot(h.astype(w2.dtype), w2, preferred_element_type=jnp.float32) + b2)
    x_new = x + y
    acc_ref[...] = x_new

    @pl.when(blk == pl.num_programs(1) - 1)
    def _finalize():
        o_ref[...] = (
            jnp.dot(x_new.astype(wo_ref.dtype), wo_ref[...],
                    preferred_element_type=jnp.float32) + bo_ref[...]
        ).astype(o_ref.dtype)


def prepare_params(w1s, b1s, w2s, b2s, wo, bo, *, weight_dtype=jnp.float32):
    """One-time conversion of PyTorch-convention params to kernel layout.

    w1s/b1s/w2s/b2s: lists (len = block_num) of (m,m) weights / (m,) biases in
    PyTorch Linear convention (out, in).  wo: (out, m), bo: (out,).

    Weights are transposed to (in, out), zero-padded to 128-lane multiples and
    stacked; the two per-block biases are packed into one sublane-dense
    (n_blocks, 2, m_pad) array.  weight_dtype=jnp.bfloat16 halves weight
    VMEM/HBM traffic and runs the MXU at full bf16 rate on v6e/v7x
    (accumulation stays f32 in the kernel); keep f32 on v5e or when an exact
    f32 match is required.  Do this ONCE per model, not per forward call.
    """
    m = w1s[0].shape[0]
    out_dim = wo.shape[0]
    m_pad = _round_up(m, LANE)
    out_pad = _round_up(out_dim, LANE)

    def pad_wt(w, ncols):
        wt = w.T  # (in, out)
        wt = jnp.pad(wt, ((0, m_pad - wt.shape[0]), (0, ncols - wt.shape[1])))
        return wt.astype(weight_dtype)

    def pad_b(b, ncols):
        return jnp.pad(b, (0, ncols - b.shape[0])).astype(jnp.float32)

    b12 = jnp.stack(
        [jnp.stack([pad_b(b1, m_pad), pad_b(b2, m_pad)])
         for b1, b2 in zip(b1s, b2s)])              # (n_blocks, 2, m_pad)

    return dict(
        w1=jnp.stack([pad_wt(w, m_pad) for w in w1s]),   # (n_blocks, m_pad, m_pad)
        w2=jnp.stack([pad_wt(w, m_pad) for w in w2s]),
        b12=b12,
        wo=pad_wt(wo, out_pad),                          # (m_pad, out_pad)
        bo=pad_b(bo, out_pad).reshape(1, out_pad),
        m=m, out_dim=out_dim, m_pad=m_pad, out_pad=out_pad,
        n_blocks=len(w1s),
        weight_dtype=weight_dtype,
    )


def model_forward(x, params, *, tile_b=None, vmem_budget_bytes=None):
    """x: (B, m) float32.  params: output of prepare_params()."""
    B, m = x.shape
    assert m == params["m"]
    m_pad, out_pad, out_dim = params["m_pad"], params["out_pad"], params["out_dim"]
    n_blocks = params["n_blocks"]
    assert n_blocks >= 1
    wbytes = jnp.dtype(params["weight_dtype"]).itemsize

    # Per-core resident VMEM that does NOT scale with tile_b:
    #   w1 + w2        : double-buffered (next block prefetched under compute)
    #   packed biases  : double-buffered
    #   wo + bo        : constant index (count 2 buffers to be safe)
    resident = (2 * 2 * m_pad * m_pad * wbytes
                + 2 * 2 * m_pad * 4
                + 2 * (m_pad * out_pad * wbytes + out_pad * 4))
    # Per-batch-row VMEM: x (2 bufs) + out (2 bufs) + acc scratch (1 buf).
    per_row = 2 * m * x.dtype.itemsize + 2 * out_pad * 4 + m_pad * 4

    if vmem_budget_bytes is None:
        # Conservative across generations (v7x: 64 MiB/TC physical; v5e/v6e
        # scoped defaults are 16/32 MiB, raised explicitly below).
        vmem_budget_bytes = 48 << 20

    if tile_b is None:
        tile_b = _pick_tile_b(B, per_row, resident, vmem_budget_bytes)
    assert B % tile_b == 0
    num_tiles = B // tile_b

    needed = resident + tile_b * per_row
    vmem_limit = int(min(64 << 20, max(16 << 20, needed + needed // 2 + (2 << 20))))

    kernel = functools.partial(_resblock_stream_kernel, m=m)

    out_padded = pl.pallas_call(
        kernel,
        out_shape=jax.ShapeDtypeStruct((B, out_pad), x.dtype),
        grid_spec=pltpu.PrefetchScalarGridSpec(
            num_scalar_prefetch=0,
            grid=(num_tiles, n_blocks),
            in_specs=[
                pl.BlockSpec((tile_b, m), lambda i, blk: (i, 0)),             # x tile
                pl.BlockSpec((1, m_pad, m_pad), lambda i, blk: (blk, 0, 0)),  # W1^T
                pl.BlockSpec((1, m_pad, m_pad), lambda i, blk: (blk, 0, 0)),  # W2^T
                pl.BlockSpec((1, 2, m_pad), lambda i, blk: (blk, 0, 0)),      # [b1;b2]
                pl.BlockSpec((m_pad, out_pad), lambda i, blk: (0, 0)),        # Wout^T
                pl.BlockSpec((1, out_pad), lambda i, blk: (0, 0)),            # bout
            ],
            out_specs=pl.BlockSpec((tile_b, out_pad), lambda i, blk: (i, 0)),
            scratch_shapes=[pltpu.VMEM((tile_b, m_pad), jnp.float32)],
        ),
        compiler_params=pltpu.CompilerParams(
            dimension_semantics=("parallel", "arbitrary"),
            vmem_limit_bytes=vmem_limit,
        ),
    )(x, params["w1"], params["w2"], params["b12"], params["wo"], params["bo"])

    return out_padded[:, :out_dim]


def model_ref(x, w1s, b1s, w2s, b2s, wo, bo):
    for w1, b1, w2, b2 in zip(w1s, b1s, w2s, b2s):
        h = jnp.tanh(x @ w1.T + b1)
        y = jnp.tanh(h @ w2.T + b2)
        x = x + y
    return x @ wo.T + bo


def _make_model(key, m, block_num, out_dim):
    bound = 1.0 / float(jnp.sqrt(jnp.float32(m)))
    keys = jax.random.split(key, 4 * block_num + 2)

    def u(k, shape):
        return jax.random.uniform(k, shape, minval=-bound, maxval=bound,
                                  dtype=jnp.float32)

    w1s, b1s, w2s, b2s = [], [], [], []
    ki = 0
    for _ in range(block_num):
        w1s.append(u(keys[ki], (m, m))); ki += 1
        b1s.append(u(keys[ki], (m,)));   ki += 1
        w2s.append(u(keys[ki], (m, m))); ki += 1
        b2s.append(u(keys[ki], (m,)));   ki += 1
    wo = u(keys[ki], (out_dim, m)); ki += 1
    bo = u(keys[ki], (out_dim,))
    return w1s, b1s, w2s, b2s, wo, bo


if __name__ == "__main__":
    root = jax.random.PRNGKey(0)

    # Config 1: small, feature dim not lane-aligned (exercises in-kernel pad).
    k1, k2, kx1, kx2 = jax.random.split(root, 4)
    B1, m1, blocks1, out1 = 8, 32, 2, 16
    p1 = _make_model(k1, m1, blocks1, out1)
    x1 = jax.random.normal(kx1, (B1, m1), dtype=jnp.float32)
    params1 = prepare_params(*p1)
    out_a = jax.block_until_ready(model_forward(x1, params1))
    ref_a = model_ref(x1, *p1)
    assert out_a.shape == (B1, out1)
    assert jnp.allclose(out_a, ref_a, atol=1e-3, rtol=1e-3), "f32 mismatch (cfg1)"

    # Config 2: lane-aligned m, multiple batch tiles (>=2 so v7x uses both TCs),
    # 3 streamed residual blocks.
    B2, m2, blocks2, out2 = 32, 128, 3, 8
    p2 = _make_model(k2, m2, blocks2, out2)
    x2 = jax.random.normal(kx2, (B2, m2), dtype=jnp.float32)
    params2 = prepare_params(*p2)
    out_b = jax.block_until_ready(model_forward(x2, params2))
    ref_b = model_ref(x2, *p2)
    assert out_b.shape == (B2, out2)
    assert jnp.allclose(out_b, ref_b, atol=1e-3, rtol=1e-3), "f32 mismatch (cfg2)"

    # Config 2 with bf16 weights (v6e/v7x fast path); f32 accumulation keeps
    # error small but tolerance is necessarily looser than the f32 path.
    params2_bf16 = prepare_params(*p2, weight_dtype=jnp.bfloat16)
    out_c = jax.block_until_ready(model_forward(x2, params2_bf16))
    assert jnp.allclose(out_c, ref_b, atol=1e-1, rtol=1e-1), "bf16 mismatch (cfg2)"

    print("KERNEL_OK")
</pallas_src>

<mosaic_0001>
module attributes {stable_mosaic.version = 11 : i64} {
  func.func @_resblock_stream_kernel(%arg0: i32, %arg1: i32, %arg2: memref<8x32xf32, #tpu.memory_space<vmem>>, %arg3: memref<1x128x128xf32, #tpu.memory_space<vmem>>, %arg4: memref<1x128x128xf32, #tpu.memory_space<vmem>>, %arg5: memref<1x2x128xf32, #tpu.memory_space<vmem>>, %arg6: memref<128x128xf32, #tpu.memory_space<vmem>>, %arg7: memref<1x128xf32, #tpu.memory_space<vmem>>, %arg8: memref<8x128xf32, #tpu.memory_space<vmem>>, %arg9: memref<8x128xf32, #tpu.memory_space<vmem>>) attributes {dimension_semantics = [#tpu.dimension_semantics<parallel>, #tpu.dimension_semantics<arbitrary>], iteration_bounds = array<i64: 1, 2>, scalar_prefetch = 0 : i64, scratch_operands = 1 : i64, tpu.core_type = #tpu.core_type<tc>, window_params = [{transform_indices = @transform_0, window_bounds = array<i64: 8, 32>}, {transform_indices = @transform_1, window_bounds = array<i64: 1, 128, 128>}, {transform_indices = @transform_2, window_bounds = array<i64: 1, 128, 128>}, {transform_indices = @transform_3, window_bounds = array<i64: 1, 2, 128>}, {pipeline_mode = #tpu.pipeline_mode<synchronous>, transform_indices = @transform_4, window_bounds = array<i64: 128, 128>}, {pipeline_mode = #tpu.pipeline_mode<synchronous>, transform_indices = @transform_5, window_bounds = array<i64: 1, 128>}, {transform_indices = @transform_6, window_bounds = array<i64: 8, 128>}]} {
    %c0_i32 = arith.constant 0 : i32
    %0 = arith.cmpi eq, %arg1, %c0_i32 : i32
    %1 = arith.extui %0 : i1 to i32
    %c0_i32_0 = arith.constant 0 : i32
    %2 = arith.cmpi ne, %1, %c0_i32_0 : i32
    scf.if %2 {
      %cst_15 = arith.constant 0.000000e+00 : f32
      %25 = vector.broadcast %cst_15 : f32 to vector<8x128xf32>
      %c0_16 = arith.constant 0 : index
      %c0_17 = arith.constant 0 : index
      %26 = vector.load %arg9[%c0_16, %c0_17] : memref<8x128xf32, #tpu.memory_space<vmem>>, vector<8x128xf32>
      tpu.vector_store %arg9[%c0_16, %c0_17], %25 {strides = array<i32>} : memref<8x128xf32, #tpu.memory_space<vmem>>, vector<8x128xf32>,
      %c0_18 = arith.constant 0 : index
      %c0_19 = arith.constant 0 : index
      %27 = vector.load %arg2[%c0_18, %c0_19] : memref<8x32xf32, #tpu.memory_space<vmem>>, vector<8x32xf32>
      %c0_20 = arith.constant 0 : index
      %c0_21 = arith.constant 0 : index
      %28 = vector.load %arg9[%c0_20, %c0_21] : memref<8x128xf32, #tpu.memory_space<vmem>>, vector<8x32xf32>
      tpu.vector_store %arg9[%c0_20, %c0_21], %27 {strides = array<i32>} : memref<8x128xf32, #tpu.memory_space<vmem>>, vector<8x32xf32>,
    } else {
    }
    %c0 = arith.constant 0 : index
    %c0_1 = arith.constant 0 : index
    %3 = vector.load %arg9[%c0, %c0_1] : memref<8x128xf32, #tpu.memory_space<vmem>>, vector<8x128xf32>
    %c0_2 = arith.constant 0 : index
    %c0_3 = arith.constant 0 : index
    %c0_4 = arith.constant 0 : index
    %4 = vector.load %arg3[%c0_2, %c0_3, %c0_4] : memref<1x128x128xf32, #tpu.memory_space<vmem>>, vector<1x128x128xf32>
    %5 = vector.shape_cast %4 : vector<1x128x128xf32> to vector<128x128xf32>
    %c0_5 = arith.constant 0 : index
    %c0_6 = arith.constant 0 : index
    %c0_7 = arith.constant 0 : index
    %6 = vector.load %arg4[%c0_5, %c0_6, %c0_7] : memref<1x128x128xf32, #tpu.memory_space<vmem>>, vector<1x128x128xf32>
    %7 = vector.shape_cast %6 : vector<1x128x128xf32> to vector<128x128xf32>
    %c0_8 = arith.constant 0 : index
    %c0_9 = arith.constant 0 : index
    %c0_10 = arith.constant 0 : index
    %8 = vector.load %arg5[%c0_8, %c0_9, %c0_10] : memref<1x2x128xf32, #tpu.memory_space<vmem>>, vector<1x2x128xf32>
    %9 = vector.shape_cast %8 : vector<1x2x128xf32> to vector<2x128xf32>
    %10 = vector.extract_strided_slice %9 {offsets = [0, 0], sizes = [1, 128], strides = [1, 1]} : vector<2x128xf32> to vector<1x128xf32>
    %11 = vector.extract_strided_slice %9 {offsets = [1, 0], sizes = [1, 128], strides = [1, 1]} : vector<2x128xf32> to vector<1x128xf32>
    %cst = arith.constant dense<0.000000e+00> : vector<8x128xf32>
    %12 = tpu.matmul %3, %5, %cst {dimension_numbers = #tpu.dot_dimension_numbers<[1], [0], [0], [1], [0, 0, 1, 1], [], []>} : vector<8x128xf32>, vector<128x128xf32>, vector<8x128xf32> -> vector<8x128xf32>
    %13 = vector.broadcast %10 : vector<1x128xf32> to vector<8x128xf32>
    %14 = arith.addf %12, %13 : vector<8x128xf32>
    %15 = math.tanh %14 : vector<8x128xf32>
    %cst_11 = arith.constant dense<0.000000e+00> : vector<8x128xf32>
    %16 = tpu.matmul %15, %7, %cst_11 {dimension_numbers = #tpu.dot_dimension_numbers<[1], [0], [0], [1], [0, 0, 1, 1], [], []>} : vector<8x128xf32>, vector<128x128xf32>, vector<8x128xf32> -> vector<8x128xf32>
    %17 = vector.broadcast %11 : vector<1x128xf32> to vector<8x128xf32>
    %18 = arith.addf %16, %17 : vector<8x128xf32>
    %19 = math.tanh %18 : vector<8x128xf32>
    %20 = arith.addf %3, %19 : vector<8x128xf32>
    %c0_12 = arith.constant 0 : index
    %c0_13 = arith.constant 0 : index
    %21 = vector.load %arg9[%c0_12, %c0_13] : memref<8x128xf32, #tpu.memory_space<vmem>>, vector<8x128xf32>
    tpu.vector_store %arg9[%c0_12, %c0_13], %20 {strides = array<i32>} : memref<8x128xf32, #tpu.memory_space<vmem>>, vector<8x128xf32>,
    %c1_i32 = arith.constant 1 : i32
    %22 = arith.cmpi eq, %arg1, %c1_i32 : i32
    %23 = arith.extui %22 : i1 to i32
    %c0_i32_14 = arith.constant 0 : i32
    %24 = arith.cmpi ne, %23, %c0_i32_14 : i32
    scf.if %24 {
      %c0_15 = arith.constant 0 : index
      %c0_16 = arith.constant 0 : index
      %25 = vector.load %arg6[%c0_15, %c0_16] : memref<128x128xf32, #tpu.memory_space<vmem>>, vector<128x128xf32>
      %cst_17 = arith.constant dense<0.000000e+00> : vector<8x128xf32>
      %26 = tpu.matmul %20, %25, %cst_17 {dimension_numbers = #tpu.dot_dimension_numbers<[1], [0], [0], [1], [0, 0, 1, 1], [], []>} : vector<8x128xf32>, vector<128x128xf32>, vector<8x128xf32> -> vector<8x128xf32>
      %c0_18 = arith.constant 0 : index
      %c0_19 = arith.constant 0 : index
      %27 = vector.load %arg7[%c0_18, %c0_19] : memref<1x128xf32, #tpu.memory_space<vmem>>, vector<1x128xf32>
      %28 = vector.broadcast %27 : vector<1x128xf32> to vector<8x128xf32>
      %29 = arith.addf %26, %28 : vector<8x128xf32>
      %c0_20 = arith.constant 0 : index
      %c0_21 = arith.constant 0 : index
      %30 = vector.load %arg8[%c0_20, %c0_21] : memref<8x128xf32, #tpu.memory_space<vmem>>, vector<8x128xf32>
      tpu.vector_store %arg8[%c0_20, %c0_21], %29 {strides = array<i32>} : memref<8x128xf32, #tpu.memory_space<vmem>>, vector<8x128xf32>,
    } else {
    }
    return
  }
  func.func @transform_0(%arg0: i32, %arg1: i32) -> (i32, i32) {
    %c0_i32 = arith.constant 0 : i32
    %c0_i32_0 = arith.constant 0 : i32
    return %arg0, %c0_i32 : i32, i32
  }
  func.func @transform_1(%arg0: i32, %arg1: i32) -> (i32, i32, i32) {
    %c0_i32 = arith.constant 0 : i32
    %c0_i32_0 = arith.constant 0 : i32
    %c0_i32_1 = arith.constant 0 : i32
    return %arg1, %c0_i32, %c0_i32_0 : i32, i32, i32
  }
  func.func @transform_2(%arg0: i32, %arg1: i32) -> (i32, i32, i32) {
    %c0_i32 = arith.constant 0 : i32
    %c0_i32_0 = arith.constant 0 : i32
    %c0_i32_1 = arith.constant 0 : i32
    return %arg1, %c0_i32, %c0_i32_0 : i32, i32, i32
  }
  func.func @transform_3(%arg0: i32, %arg1: i32) -> (i32, i32, i32) {
    %c0_i32 = arith.constant 0 : i32
    %c0_i32_0 = arith.constant 0 : i32
    %c0_i32_1 = arith.constant 0 : i32
    return %arg1, %c0_i32, %c0_i32_0 : i32, i32, i32
  }
  func.func @transform_4(%arg0: i32, %arg1: i32) -> (i32, i32) {
    %c0_i32 = arith.constant 0 : i32
    %c0_i32_0 = arith.constant 0 : i32
    %c0_i32_1 = arith.constant 0 : i32
    return %c0_i32, %c0_i32_0 : i32, i32
  }
  func.func @transform_5(%arg0: i32, %arg1: i32) -> (i32, i32) {
    %c0_i32 = arith.constant 0 : i32
    %c0_i32_0 = arith.constant 0 : i32
    %c0_i32_1 = arith.constant 0 : i32
    return %c0_i32, %c0_i32_0 : i32, i32
  }
  func.func @transform_6(%arg0: i32, %arg1: i32) -> (i32, i32) {
    %c0_i32 = arith.constant 0 : i32
    %c0_i32_0 = arith.constant 0 : i32
    return %arg0, %c0_i32 : i32, i32
  }
}

</mosaic_0001>

<llo_original>
// kernel: tpu_custom_call.1
$region0: #{tpu_custom_call.1}
  #allocation0 [shape = 'u32[]', space=smem, size = 0x4, offset = 0x4, fixed_abs, tag = 'smem constant byte address 0x4 - core index']
  #allocation1 [shape = 'u32[144,128]{1,0:T(1,128)}', space=vmem, size = 0x12000, scoped, tag = 'internal scratch']
  #allocation2 [shape = 'f32[8,128]{1,0:T(8,128)}', space=vmem, size = 0x1000, scoped, tag = 'scratch operand']
  %s0 = inlined_call_operand.hbm [shape: f32[8,32], index: 0, kind: input, shape index: {}]
  %s1 = inlined_call_operand.hbm [shape: f32[2,128,128], index: 1, kind: input, shape index: {}]
  %s2 = inlined_call_operand.hbm [shape: f32[2,128,128], index: 2, kind: input, shape index: {}]
  %s3 = inlined_call_operand.vmem [shape: f32[2,2,128], index: 3, kind: input, shape index: {}]
  %s4 = inlined_call_operand.hbm [shape: f32[128,128], index: 4, kind: input, shape index: {}]
  %s5 = inlined_call_operand.vmem [shape: f32[1,128], index: 5, kind: input, shape index: {}]
  %s6 = inlined_call_operand.hbm [shape: f32[8,128], index: 6, kind: output, shape index: {}]
  %s7 = sld [smem:[#allocation0]]
  $region81: #{tpu_custom_call.1} parent=0
    _
  %s9 = ssub.s32 1, %s7
  %s10 = scalar_select 0, %s9, %s7
  $region1: #{tpu_custom_call.1} parent=0
    #allocation3 [shape = 'u8[4096]{0}', space=vmem, size = 0x1000, scoped, tag = 'input window, operand 0, single buffered']
    #allocation4 [shape = 's32[2]{0}', space=sflag, size = 0x8, scoped, tag = 'scoped memory for tpu_custom_call.1']
    #allocation5 [shape = 's32[2]{0}', space=sflag, size = 0x8, scoped, tag = 'scoped memory for tpu_custom_call.1']
    #allocation6 [shape = 'u8[131072]{0}', space=vmem, size = 0x20000, scoped, tag = 'input window, operand 1']
    #allocation7 [shape = 's32[2]{0}', space=sflag, size = 0x8, scoped, tag = 'scoped memory for tpu_custom_call.1']
    #allocation8 [shape = 'u8[131072]{0}', space=vmem, size = 0x20000, scoped, tag = 'input window, operand 2']
    #allocation9 [shape = 'u8[65536]{0}', space=vmem, size = 0x10000, scoped, tag = 'input window, operand 4, single buffered']
    #allocation10 [shape = 's32[1]{0}', space=sflag, size = 0x4, scoped, tag = 'scoped memory for tpu_custom_call.1']
    #allocation11 [shape = 'u8[4096]{0}', space=vmem, size = 0x1000, scoped, tag = 'output window, operand 0, single buffered']
    %11 = vsyncpa [#allocation4], 0
    %12 = vsyncpa [#allocation7], 0
    %s13 = scalar_lea.sflag [#allocation7], 1
    %14 = vsyncpa %s13, 0
    %15 = vsyncpa [#allocation10], 0
    %16 = vsyncpa [#allocation5], 0
    loop: start=0, step=1, limit=4
    $region2: #{tpu_custom_call.1} parent=1 // loop_pre_header
      _
    $region3: #{tpu_custom_call.1} parent=1 // loop_header
      %s18 = sphi 0, %s22
      %p19 = scmp.ge.s32.totalorder %s18, 4
      %s25 = sphi 0, %s37
      %s26 = sphi 0, %s33
      %s27 = sphi 0, %s25
      %s28 = sphi 0, %s26
      %s29 = sphi 0, %s27
      %s30 = sphi 0, %s28
      %s40 = sphi 0, %s42
      %s43 = sphi 0, %s40
      %s44 = sphi 0, %s43
      %s60 = sphi 0, %s44
      %s66 = sphi 0, %s68
      %s69 = sphi 0, %s66
      %s70 = sphi 0, %s69
      %s86 = sphi 0, %s70
      %s92 = sphi 0, %s94
      %s95 = sphi 0, %s92
      %s96 = sphi 0, %s95
      %s112 = sphi 0, %s96
      %s118 = sphi 0, %s120
      %s121 = sphi 0, %s118
      %s122 = sphi 0, %s121
      %s138 = sphi 0, %s122
      %s142 = sphi 0, %s142
      %s144 = sphi 0, %s142
      %s145 = sphi 0, %s144
      %s159 = sphi 0, %s145
      %s163 = sphi 0, %s163
      %s165 = sphi 0, %s163
      %s166 = sphi 0, %s165
      %s180 = sphi 0, %s166
      %s186 = sphi 0, %s188
      %s189 = sphi 0, %s186
      %s190 = sphi 0, %s189
      %s206 = sphi 0, %s190
    $region4: #{tpu_custom_call.1} parent=1 // loop_header_branch
      %21 = sbr.rel (%p19) target = $region8
    $region5: #{tpu_custom_call.1} parent=1 // loop_body
      %s23 = ssub.s32 %s18, 1
      %s24 = ssub.s32 %s18, 2
      %s31 = sadd.s32 1, %s26
      %p32 = scmp.ge.s32.totalorder %s31, 2
      %s33 = scalar_select %p32, 0, %s31
      %s34 = sadd.s32 1, %s25
      %s35 = scalar_select %p32, %s34, %s25
      %p36 = scmp.ge.s32.totalorder %s35, 1
      %s37 = scalar_select %p36, 0, %s35
      %s38 = ssub.s32 %s25, %s37
      %p39 = scmp.eq.s32.totalorder %s38, 0
      %s41 = sadd.s32 %s40, 1
      %s42 = scalar_select %p39, %s40, %s41
      %p45 = pneg %p39
      %p46 = scmp.eq.s32.totalorder %s18, 1
      %p47 = por %p45, %p46
      %p48 = scmp.ne.s32.totalorder %s40, %s43
      %p49 = scmp.eq.s32.totalorder %s18, 0
      %p50 = por %p48, %p49
      %p51 = scmp.ne.s32.totalorder %s40, %s43
      %p52 = scmp.eq.s32.totalorder %s23, 1
      %p53 = por %p51, %p52
      %p54 = scmp.ne.s32.totalorder %s43, %s44
      %p55 = scmp.eq.s32.totalorder %s23, 0
      %p56 = por %p54, %p55
      %p57 = scmp.ne.s32.totalorder %s43, %s44
      %p58 = scmp.eq.s32.totalorder %s24, 1
      %p59 = por %p57, %p58
      %p61 = scmp.ne.s32.totalorder %s44, %s60
      %p62 = scmp.eq.s32.totalorder %s24, 0
      %p63 = por %p61, %p62
      %s64 = ssub.s32 %s26, %s33
      %p65 = scmp.eq.s32.totalorder %s64, 0
      %s67 = sadd.s32 %s66, 1
      %s68 = scalar_select %p65, %s66, %s67
      %p71 = pneg %p65
      %p72 = scmp.eq.s32.totalorder %s18, 1
      %p73 = por %p71, %p72
      %p74 = scmp.ne.s32.totalorder %s66, %s69
      %p75 = scmp.eq.s32.totalorder %s18, 0
      %p76 = por %p74, %p75
      %p77 = scmp.ne.s32.totalorder %s66, %s69
      %p78 = scmp.eq.s32.totalorder %s23, 1
      %p79 = por %p77, %p78
      %p80 = scmp.ne.s32.totalorder %s69, %s70
      %p81 = scmp.eq.s32.totalorder %s23, 0
      %p82 = por %p80, %p81
      %p83 = scmp.ne.s32.totalorder %s69, %s70
      %p84 = scmp.eq.s32.totalorder %s24, 1
      %p85 = por %p83, %p84
      %p87 = scmp.ne.s32.totalorder %s70, %s86
      %p88 = scmp.eq.s32.totalorder %s24, 0
      %p89 = por %p87, %p88
      %s90 = ssub.s32 %s26, %s33
      %p91 = scmp.eq.s32.totalorder %s90, 0
      %s93 = sadd.s32 %s92, 1
      %s94 = scalar_select %p91, %s92, %s93
      %p97 = pneg %p91
      %p98 = scmp.eq.s32.totalorder %s18, 1
      %p99 = por %p97, %p98
      %p100 = scmp.ne.s32.totalorder %s92, %s95
      %p101 = scmp.eq.s32.totalorder %s18, 0
      %p102 = por %p100, %p101
      %p103 = scmp.ne.s32.totalorder %s92, %s95
      %p104 = scmp.eq.s32.totalorder %s23, 1
      %p105 = por %p103, %p104
      %p106 = scmp.ne.s32.totalorder %s95, %s96
      %p107 = scmp.eq.s32.totalorder %s23, 0
      %p108 = por %p106, %p107
      %p109 = scmp.ne.s32.totalorder %s95, %s96
      %p110 = scmp.eq.s32.totalorder %s24, 1
      %p111 = por %p109, %p110
      %p113 = scmp.ne.s32.totalorder %s96, %s112
      %p114 = scmp.eq.s32.totalorder %s24, 0
      %p115 = por %p113, %p114
      %s116 = ssub.s32 %s26, %s33
      %p117 = scmp.eq.s32.totalorder %s116, 0
      %s119 = sadd.s32 %s118, 1
      %s120 = scalar_select %p117, %s118, %s119
      %p123 = pneg %p117
      %p124 = scmp.eq.s32.totalorder %s18, 1
      %p125 = por %p123, %p124
      %p126 = scmp.ne.s32.totalorder %s118, %s121
      %p127 = scmp.eq.s32.totalorder %s18, 0
      %p128 = por %p126, %p127
      %p129 = scmp.ne.s32.totalorder %s118, %s121
      %p130 = scmp.eq.s32.totalorder %s23, 1
      %p131 = por %p129, %p130
      %p132 = scmp.ne.s32.totalorder %s121, %s122
      %p133 = scmp.eq.s32.totalorder %s23, 0
      %p134 = por %p132, %p133
      %p135 = scmp.ne.s32.totalorder %s121, %s122
      %p136 = scmp.eq.s32.totalorder %s24, 1
      %p137 = por %p135, %p136
      %p139 = scmp.ne.s32.totalorder %s122, %s138
      %p140 = scmp.eq.s32.totalorder %s24, 0
      %p141 = por %p139, %p140
      %s143 = sadd.s32 %s142, 1
      %p146 = scmp.eq.s32.totalorder %s18, 1
      %p147 = scmp.ne.s32.totalorder %s142, %s144
      %p148 = scmp.eq.s32.totalorder %s18, 0
      %p149 = por %p147, %p148
      %p150 = scmp.ne.s32.totalorder %s142, %s144
      %p151 = scmp.eq.s32.totalorder %s23, 1
      %p152 = por %p150, %p151
      %p153 = scmp.ne.s32.totalorder %s144, %s145
      %p154 = scmp.eq.s32.totalorder %s23, 0
      %p155 = por %p153, %p154
      %p156 = scmp.ne.s32.totalorder %s144, %s145
      %p157 = scmp.eq.s32.totalorder %s24, 1
      %p158 = por %p156, %p157
      %p160 = scmp.ne.s32.totalorder %s145, %s159
      %p161 = scmp.eq.s32.totalorder %s24, 0
      %p162 = por %p160, %p161
      %s164 = sadd.s32 %s163, 1
      %p167 = scmp.eq.s32.totalorder %s18, 1
      %p168 = scmp.ne.s32.totalorder %s163, %s165
      %p169 = scmp.eq.s32.totalorder %s18, 0
      %p170 = por %p168, %p169
      %p171 = scmp.ne.s32.totalorder %s163, %s165
      %p172 = scmp.eq.s32.totalorder %s23, 1
      %p173 = por %p171, %p172
      %p174 = scmp.ne.s32.totalorder %s165, %s166
      %p175 = scmp.eq.s32.totalorder %s23, 0
      %p176 = por %p174, %p175
      %p177 = scmp.ne.s32.totalorder %s165, %s166
      %p178 = scmp.eq.s32.totalorder %s24, 1
      %p179 = por %p177, %p178
      %p181 = scmp.ne.s32.totalorder %s166, %s180
      %p182 = scmp.eq.s32.totalorder %s24, 0
      %p183 = por %p181, %p182
      %s184 = ssub.s32 %s25, %s37
      %p185 = scmp.eq.s32.totalorder %s184, 0
      %s187 = sadd.s32 %s186, 1
      %s188 = scalar_select %p185, %s186, %s187
      %p191 = pneg %p185
      %p192 = scmp.eq.s32.totalorder %s18, 1
      %p193 = por %p191, %p192
      %p194 = scmp.ne.s32.totalorder %s186, %s189
      %p195 = scmp.eq.s32.totalorder %s18, 0
      %p196 = por %p194, %p195
      %p197 = scmp.ne.s32.totalorder %s186, %s189
      %p198 = scmp.eq.s32.totalorder %s23, 1
      %p199 = por %p197, %p198
      %p200 = scmp.ne.s32.totalorder %s189, %s190
      %p201 = scmp.eq.s32.totalorder %s23, 0
      %p202 = por %p200, %p201
      %p203 = scmp.ne.s32.totalorder %s189, %s190
      %p204 = scmp.eq.s32.totalorder %s24, 1
      %p205 = por %p203, %p204
      %p207 = scmp.ne.s32.totalorder %s190, %s206
      %p208 = scmp.eq.s32.totalorder %s24, 0
      %p209 = por %p207, %p208
      %p210 = scmp.le.s32.totalorder 1, %s18
      %p211 = scmp.lt.s32.totalorder %s18, 3
      %p212 = pnand %p210, %p211
      %p213 = pneg %p212
      // Predicated region
      $region9: #{tpu_custom_call.1} parent=5 // pred_check
        _
      $region10: #{tpu_custom_call.1} parent=5 // pred_check_branch
        %215 = sbr.rel (%p212) target = $region12
      $region11: #{tpu_custom_call.1} parent=5 // pred_region
        %s216 = ssub.s32 %s18, 1
        // Predicated region
        $region13: #{tpu_custom_call.1} parent=11 // pred_check
          %p217 = pneg %p56
        $region14: #{tpu_custom_call.1} parent=11 // pred_check_branch
          %219 = sbr.rel (%p217) target = $region16
        $region15: #{tpu_custom_call.1} parent=11 // pred_region
          %s221 = ssub.s32 128, 128
          %222 = vsyncadd [#allocation4], %s221
          %s223 = smul.addr %s27, 128
          %s224 = scalar_lea.hbm %s0, %s223
          %s226 = sshll.u32 [#allocation3], 4
          %s227 = int_to_ptr.vmem [resolvable:$true] %s226
          %229 = dma.hbm_to_vmem [thread:$0]  %s224, 128, %s227, [#allocation4]
        $region16: #{tpu_custom_call.1} parent=11 // pred_fallthru
          _
        // Predicated region
        $region17: #{tpu_custom_call.1} parent=11 // pred_check
          %p230 = pneg %p155
        $region18: #{tpu_custom_call.1} parent=11 // pred_check_branch
          %232 = sbr.rel (%p230) target = $region20
        $region19: #{tpu_custom_call.1} parent=11 // pred_region
          %s234 = ssub.s32 2048, 2048
          %235 = vsyncadd [#allocation10], %s234
          %s236 = sshll.u32 [#allocation9], 4
          %s237 = int_to_ptr.vmem [resolvable:$true] %s236
          %242 = dma.hbm_to_vmem [thread:$0]  %s4, 2048, %s237, [#allocation10], 128, 128, 8
        $region20: #{tpu_custom_call.1} parent=11 // pred_fallthru
          _
        // Predicated region
        $region21: #{tpu_custom_call.1} parent=11 // pred_check
          %p243 = pneg %p176
        $region22: #{tpu_custom_call.1} parent=11 // pred_check_branch
          %245 = sbr.rel (%p243) target = $region24
        $region23: #{tpu_custom_call.1} parent=11 // pred_region
          _
        $region24: #{tpu_custom_call.1} parent=11 // pred_fallthru
          _
      $region12: #{tpu_custom_call.1} parent=5 // pred_fallthru
        _
      %p246 = scmp.lt.s32.totalorder %s18, 2
      // Predicated region
      $region25: #{tpu_custom_call.1} parent=5 // pred_check
        %p247 = pneg %p246
      $region26: #{tpu_custom_call.1} parent=5 // pred_check_branch
        %249 = sbr.rel (%p247) target = $region28
      $region27: #{tpu_custom_call.1} parent=5 // pred_region
        // Predicated region
        $region29: #{tpu_custom_call.1} parent=27 // pred_check
          %p250 = pneg %p76
        $region30: #{tpu_custom_call.1} parent=27 // pred_check_branch
          %252 = sbr.rel (%p250) target = $region32
        $region31: #{tpu_custom_call.1} parent=27 // pred_region
          %s253 = sand.u32 %s18, 1
          %s254 = scalar_lea.sflag [#allocation7], %s253
          %s255 = sand.u32 %s66, 1
          %s256 = smul.addr %s255, 128
          %s257 = scalar_lea.vmem [#allocation6], %s256
          %s259 = ssub.s32 2048, 2048
          %260 = vsyncadd %s254, %s259
          %s261 = smul.addr %s26, 16
          %s262 = smul.addr %s261, 128
          %s263 = scalar_lea.hbm %s1, %s262
          %s264 = sshll.u32 %s257, 4
          %s265 = int_to_ptr.vmem [resolvable:$true] %s264
          %270 = dma.hbm_to_vmem [thread:$0]  %s263, 2048, %s265, %s254, 128, 128, 8
        $region32: #{tpu_custom_call.1} parent=27 // pred_fallthru
          _
        // Predicated region
        $region33: #{tpu_custom_call.1} parent=27 // pred_check
          %p271 = pneg %p102
        $region34: #{tpu_custom_call.1} parent=27 // pred_check_branch
          %273 = sbr.rel (%p271) target = $region36
        $region35: #{tpu_custom_call.1} parent=27 // pred_region
          %s274 = sand.u32 %s18, 1
          %s275 = scalar_lea.sflag [#allocation7], %s274
          %s276 = sand.u32 %s92, 1
          %s277 = smul.addr %s276, 128
          %s278 = scalar_lea.vmem [#allocation8], %s277
          %s280 = ssub.s32 2048, 2048
          %281 = vsyncadd %s275, %s280
          %s282 = smul.addr %s26, 16
          %s283 = smul.addr %s282, 128
          %s284 = scalar_lea.hbm %s2, %s283
          %s285 = sshll.u32 %s278, 4
          %s286 = int_to_ptr.vmem [resolvable:$true] %s285
          %291 = dma.hbm_to_vmem [thread:$0]  %s284, 2048, %s286, %s275, 128, 128, 8
        $region36: #{tpu_custom_call.1} parent=27 // pred_fallthru
          _
        // Predicated region
        $region37: #{tpu_custom_call.1} parent=27 // pred_check
          %p292 = pneg %p128
        $region38: #{tpu_custom_call.1} parent=27 // pred_check_branch
          %294 = sbr.rel (%p292) target = $region40
        $region39: #{tpu_custom_call.1} parent=27 // pred_region
          %p295 = scmp.lt.s32.totalorder %s26, 1
          %s296 = scalar_select %p295, %s26, 1
          %s297 = smul.addr %s296, 2
          %s298 = scalar_lea.vmem %s3, %s297
        $region40: #{tpu_custom_call.1} parent=27 // pred_fallthru
          _
      $region28: #{tpu_custom_call.1} parent=5 // pred_fallthru
        _
      %p299 = scmp.le.s32.totalorder 1, %s18
      %p300 = scmp.lt.s32.totalorder %s18, 3
      %p301 = pnand %p299, %p300
      %p302 = pneg %p301
      // Predicated region
      $region41: #{tpu_custom_call.1} parent=5 // pred_check
        _
      $region42: #{tpu_custom_call.1} parent=5 // pred_check_branch
        %304 = sbr.rel (%p301) target = $region44
      $region43: #{tpu_custom_call.1} parent=5 // pred_region
        %s305 = ssub.s32 %s18, 1
        // Predicated region
        $region45: #{tpu_custom_call.1} parent=43 // pred_check
          %p306 = pneg %p56
        $region46: #{tpu_custom_call.1} parent=43 // pred_check_branch
          %308 = sbr.rel (%p306) target = $region48
        $region47: #{tpu_custom_call.1} parent=43 // pred_region
          %309 = dma.done [#allocation4], 128
        $region48: #{tpu_custom_call.1} parent=43 // pred_fallthru
          _
        %s310 = sand.u32 %s23, 1
        %s311 = scalar_lea.sflag [#allocation7], %s310
        %s312 = sand.u32 %s69, 1
        %s313 = smul.addr %s312, 128
        %s314 = scalar_lea.vmem [#allocation6], %s313
        // Predicated region
        $region49: #{tpu_custom_call.1} parent=43 // pred_check
          %p315 = pneg %p82
        $region50: #{tpu_custom_call.1} parent=43 // pred_check_branch
          %317 = sbr.rel (%p315) target = $region52
        $region51: #{tpu_custom_call.1} parent=43 // pred_region
          %318 = dma.done %s311, 2048
        $region52: #{tpu_custom_call.1} parent=43 // pred_fallthru
          _
        %s319 = sand.u32 %s23, 1
        %s320 = scalar_lea.sflag [#allocation7], %s319
        %s321 = sand.u32 %s95, 1
        %s322 = smul.addr %s321, 128
        %s323 = scalar_lea.vmem [#allocation8], %s322
        // Predicated region
        $region53: #{tpu_custom_call.1} parent=43 // pred_check
          %p324 = pneg %p108
        $region54: #{tpu_custom_call.1} parent=43 // pred_check_branch
          %326 = sbr.rel (%p324) target = $region56
        $region55: #{tpu_custom_call.1} parent=43 // pred_region
          %327 = dma.done %s320, 2048
        $region56: #{tpu_custom_call.1} parent=43 // pred_fallthru
          _
        // Predicated region
        $region57: #{tpu_custom_call.1} parent=43 // pred_check
          %p328 = pneg %p155
        $region58: #{tpu_custom_call.1} parent=43 // pred_check_branch
          %330 = sbr.rel (%p328) target = $region60
        $region59: #{tpu_custom_call.1} parent=43 // pred_region
          %331 = dma.done [#allocation10], 2048
        $region60: #{tpu_custom_call.1} parent=43 // pred_fallthru
          _
        %p332 = pneg %p56
        %p333 = pneg %p53
        %s334 = sand.u32 %s23, 1
        %s335 = scalar_lea.sflag [#allocation7], %s334
        %s336 = sand.u32 %s69, 1
        %s337 = smul.addr %s336, 128
        %s338 = scalar_lea.vmem [#allocation6], %s337
        %p339 = pneg %p82
        %p340 = pneg %p79
        %s341 = sand.u32 %s23, 1
        %s342 = scalar_lea.sflag [#allocation7], %s341
        %s343 = sand.u32 %s95, 1
        %s344 = smul.addr %s343, 128
        %s345 = scalar_lea.vmem [#allocation8], %s344
        %p346 = pneg %p108
        %p347 = pneg %p105
        %p348 = scmp.lt.s32.totalorder %s28, 1
        %s349 = scalar_select %p348, %s28, 1
        %s350 = smul.addr %s349, 2
        %s351 = scalar_lea.vmem %s3, %s350
        %p352 = pneg %p134
        %p353 = pneg %p131
        %p354 = pneg %p155
        %p355 = pneg %p152
        %p356 = pneg %p176
        %p357 = pneg %p173
        %p358 = pneg %p202
        %p359 = pneg %p199
        %p360 = scmp.lt.s32.totalorder %s28, 1
        %s361 = scalar_select %p360, %s28, 1
        %s362 = smul.addr %s361, 2
        %s363 = scalar_lea.vmem %s3, %s362
        %p364 = scmp.eq.s32.totalorder %s28, 0
        // Predicated region
        $region61: #{tpu_custom_call.1} parent=43 // pred_check
          %p365 = pneg %p364
        $region62: #{tpu_custom_call.1} parent=43 // pred_check_branch
          %367 = sbr.rel (%p365) target = $region64
        $region63: #{tpu_custom_call.1} parent=43 // pred_region
          %368 = vst [vmem:[#allocation2] sm:$0xff] 0.0
          %v369 = vld [vmem:[#allocation3] sm:$0xff]
          %vm370 = vcmask 261120
          %371 = vst.msk [vmem:[#allocation2] sm:$0xff] %vm370, %v369
        $region64: #{tpu_custom_call.1} parent=43 // pred_fallthru
          _
        %v372 = vld [vmem:[#allocation2] sm:$0xff]
        %v373 = vld [vmem:[%s314] sm:$0xff]
        %v374 = vld [vmem:[%s314 + $0x8] sm:$0xff]
        %v375 = vld [vmem:[%s314 + $0x10] sm:$0xff]
        %v376 = vld [vmem:[%s314 + $0x18] sm:$0xff]
        %v377 = vld [vmem:[%s314 + $0x20] sm:$0xff]
        %v378 = vld [vmem:[%s314 + $0x28] sm:$0xff]
        %v379 = vld [vmem:[%s314 + $0x30] sm:$0xff]
        %v380 = vld [vmem:[%s314 + $0x38] sm:$0xff]
        %v381 = vld [vmem:[%s314 + $0x40] sm:$0xff]
        %v382 = vld [vmem:[%s314 + $0x48] sm:$0xff]
        %v383 = vld [vmem:[%s314 + $0x50] sm:$0xff]
        %v384 = vld [vmem:[%s314 + $0x58] sm:$0xff]
        %v385 = vld [vmem:[%s314 + $0x60] sm:$0xff]
        %v386 = vld [vmem:[%s314 + $0x68] sm:$0xff]
        %v387 = vld [vmem:[%s314 + $0x70] sm:$0xff]
        %v388 = vld [vmem:[%s314 + $0x78] sm:$0xff]
        %v389 = vld [vmem:[%s323] sm:$0xff]
        %v390 = vld [vmem:[%s323 + $0x8] sm:$0xff]
        %v391 = vld [vmem:[%s323 + $0x10] sm:$0xff]
        %v392 = vld [vmem:[%s323 + $0x18] sm:$0xff]
        %v393 = vld [vmem:[%s323 + $0x20] sm:$0xff]
        %v394 = vld [vmem:[%s323 + $0x28] sm:$0xff]
        %v395 = vld [vmem:[%s323 + $0x30] sm:$0xff]
        %v396 = vld [vmem:[%s323 + $0x38] sm:$0xff]
        %v397 = vld [vmem:[%s323 + $0x40] sm:$0xff]
        %v398 = vld [vmem:[%s323 + $0x48] sm:$0xff]
        %v399 = vld [vmem:[%s323 + $0x50] sm:$0xff]
        %v400 = vld [vmem:[%s323 + $0x58] sm:$0xff]
        %v401 = vld [vmem:[%s323 + $0x60] sm:$0xff]
        %v402 = vld [vmem:[%s323 + $0x68] sm:$0xff]
        %v403 = vld [vmem:[%s323 + $0x70] sm:$0xff]
        %v404 = vld [vmem:[%s323 + $0x78] sm:$0xff]
        %v405 = vld [vmem:[%s363] sm:$0x3]
        %v406 = vlaneseq
        %v407 = vshrl.u32 %v406, 7
        %v408 = vsub.s32 0, %v407
        %v409 = vrot.slane %v405, %v408
        %410 = vmatprep.subr.mxu0 0.0
        %411 = vmatpush1.msra.mxu0 %v373
        %412 = vmatprep.subr.mxu0 0.0
        %413 = vmatpush1.msra.mxu0 %v374
        %414 = vmatprep.subr.mxu0 0.0
        %415 = vmatpush1.msra.mxu0 %v375
        %416 = vmatprep.subr.mxu0 0.0
        %417 = vmatpush1.msra.mxu0 %v376
        %418 = vmatprep.subr.mxu0 0.0
        %419 = vmatpush1.msra.mxu0 %v377
        %420 = vmatprep.subr.mxu0 0.0
        %421 = vmatpush1.msra.mxu0 %v378
        %422 = vmatprep.subr.mxu0 0.0
        %423 = vmatpush1.msra.mxu0 %v379
        %424 = vmatprep.subr.mxu0 0.0
        %425 = vmatpush1.msra.mxu0 %v380
        %426 = vmatprep.subr.mxu0 0.0
        %427 = vmatpush1.msra.mxu0 %v381
        %428 = vmatprep.subr.mxu0 0.0
        %429 = vmatpush1.msra.mxu0 %v382
        %430 = vmatprep.subr.mxu0 0.0
        %431 = vmatpush1.msra.mxu0 %v383
        %432 = vmatprep.subr.mxu0 0.0
        %433 = vmatpush1.msra.mxu0 %v384
        %434 = vmatprep.subr.mxu0 0.0
        %435 = vmatpush1.msra.mxu0 %v385
        %436 = vmatprep.subr.mxu0 0.0
        %437 = vmatpush1.msra.mxu0 %v386
        %438 = vmatprep.subr.mxu0 0.0
        %439 = vmatpush1.msra.mxu0 %v387
        %440 = vmatprep.subr.mxu0 0.0
        %441 = vmatpush1.msra.mxu0 %v388
        %442 = vmatprep.subr.mxu0 0.0
        %443 = vmatpush1.msra.mxu0 0.0
        %444 = vmatprep.subr.mxu0 0.0
        %445 = vmatpush1.msra.mxu0 0.0
        %446 = vmatprep.subr.mxu0 0.0
        %447 = vmatpush1.msra.mxu0 0.0
        %448 = vmatprep.subr.mxu0 0.0
        %449 = vmatpush1.msra.mxu0 0.0
        %450 = vmatprep.subr.mxu0 0.0
        %451 = vmatpush1.msra.mxu0 0.0
        %452 = vmatprep.subr.mxu0 0.0
        %453 = vmatpush1.msra.mxu0 0.0
        %454 = vmatprep.subr.mxu0 0.0
        %455 = vmatpush1.msra.mxu0 0.0
        %456 = vmatprep.subr.mxu0 0.0
        %457 = vmatpush1.msra.mxu0 0.0
        %458 = vmatprep.subr.mxu0 0.0
        %459 = vmatpush1.msra.mxu0 0.0
        %460 = vmatprep.subr.mxu0 0.0
        %461 = vmatpush1.msra.mxu0 0.0
        %462 = vmatprep.subr.mxu0 0.0
        %463 = vmatpush1.msra.mxu0 0.0
        %464 = vmatprep.subr.mxu0 0.0
        %465 = vmatpush1.msra.mxu0 0.0
        %466 = vmatprep.subr.mxu0 0.0
        %467 = vmatpush1.msra.mxu0 0.0
        %468 = vmatprep.subr.mxu0 0.0
        %469 = vmatpush1.msra.mxu0 0.0
        %470 = vmatprep.subr.mxu0 0.0
        %471 = vmatpush1.msra.mxu0 0.0
        %472 = vmatprep.subr.mxu0 0.0
        %473 = vmatpush1.msra.mxu0 0.0
        %474 = vmatprep.mubr.f32.mxu0 0.0
        %475 = vmatmul.mubr.f32.gmra.mrb[0].mxu0 %v372
        %v476 = vpop.f32.mrb[0].mxu0
        %v477 = vadd.f32 %v409, %v476
        %v478 = vpop.f32.mrb[0].mxu0
        %479 = vdwg.mxu0
        %v480 = vtanh.pop %v477
        %v481 = vlaneseq
        %v482 = vshrl.u32 %v481, 7
        %v483 = vsub.s32 1, %v482
        %v484 = vrot.slane %v405, %v483
        %485 = vmatprep.subr.mxu0 0.0
        %486 = vmatpush1.msra.mxu0 %v389
        %487 = vmatprep.subr.mxu0 0.0
        %488 = vmatpush1.msra.mxu0 %v390
        %489 = vmatprep.subr.mxu0 0.0
        %490 = vmatpush1.msra.mxu0 %v391
        %491 = vmatprep.subr.mxu0 0.0
        %492 = vmatpush1.msra.mxu0 %v392
        %493 = vmatprep.subr.mxu0 0.0
        %494 = vmatpush1.msra.mxu0 %v393
        %495 = vmatprep.subr.mxu0 0.0
        %496 = vmatpush1.msra.mxu0 %v394
        %497 = vmatprep.subr.mxu0 0.0
        %498 = vmatpush1.msra.mxu0 %v395
        %499 = vmatprep.subr.mxu0 0.0
        %500 = vmatpush1.msra.mxu0 %v396
        %501 = vmatprep.subr.mxu0 0.0
        %502 = vmatpush1.msra.mxu0 %v397
        %503 = vmatprep.subr.mxu0 0.0
        %504 = vmatpush1.msra.mxu0 %v398
        %505 = vmatprep.subr.mxu0 0.0
        %506 = vmatpush1.msra.mxu0 %v399
        %507 = vmatprep.subr.mxu0 0.0
        %508 = vmatpush1.msra.mxu0 %v400
        %509 = vmatprep.subr.mxu0 0.0
        %510 = vmatpush1.msra.mxu0 %v401
        %511 = vmatprep.subr.mxu0 0.0
        %512 = vmatpush1.msra.mxu0 %v402
        %513 = vmatprep.subr.mxu0 0.0
        %514 = vmatpush1.msra.mxu0 %v403
        %515 = vmatprep.subr.mxu0 0.0
        %516 = vmatpush1.msra.mxu0 %v404
        %517 = vmatprep.subr.mxu0 0.0
        %518 = vmatpush1.msra.mxu0 0.0
        %519 = vmatprep.subr.mxu0 0.0
        %520 = vmatpush1.msra.mxu0 0.0
        %521 = vmatprep.subr.mxu0 0.0
        %522 = vmatpush1.msra.mxu0 0.0
        %523 = vmatprep.subr.mxu0 0.0
        %524 = vmatpush1.msra.mxu0 0.0
        %525 = vmatprep.subr.mxu0 0.0
        %526 = vmatpush1.msra.mxu0 0.0
        %527 = vmatprep.subr.mxu0 0.0
        %528 = vmatpush1.msra.mxu0 0.0
        %529 = vmatprep.subr.mxu0 0.0
        %530 = vmatpush1.msra.mxu0 0.0
        %531 = vmatprep.subr.mxu0 0.0
        %532 = vmatpush1.msra.mxu0 0.0
        %533 = vmatprep.subr.mxu0 0.0
        %534 = vmatpush1.msra.mxu0 0.0
        %535 = vmatprep.subr.mxu0 0.0
        %536 = vmatpush1.msra.mxu0 0.0
        %537 = vmatprep.subr.mxu0 0.0
        %538 = vmatpush1.msra.mxu0 0.0
        %539 = vmatprep.subr.mxu0 0.0
        %540 = vmatpush1.msra.mxu0 0.0
        %541 = vmatprep.subr.mxu0 0.0
        %542 = vmatpush1.msra.mxu0 0.0
        %543 = vmatprep.subr.mxu0 0.0
        %544 = vmatpush1.msra.mxu0 0.0
        %545 = vmatprep.subr.mxu0 0.0
        %546 = vmatpush1.msra.mxu0 0.0
        %547 = vmatprep.subr.mxu0 0.0
        %548 = vmatpush1.msra.mxu0 0.0
        %549 = vmatprep.mubr.f32.mxu0 0.0
        %550 = vmatmul.mubr.f32.gmra.mrb[0].mxu0 %v480
        %v551 = vpop.f32.mrb[0].mxu0
        %v552 = vadd.f32 %v484, %v551
        %v553 = vpop.f32.mrb[0].mxu0
        %554 = vdwg.mxu0
        %v555 = vtanh.pop %v552
        %v556 = vadd.f32 %v372, %v555
        %557 = vst [vmem:[#allocation2] sm:$0xff] %v556
        %p558 = scmp.eq.s32.totalorder %s28, 1
        // Predicated region
        $region65: #{tpu_custom_call.1} parent=43 // pred_check
          %p559 = pneg %p558
        $region66: #{tpu_custom_call.1} parent=43 // pred_check_branch
          %561 = sbr.rel (%p559) target = $region68
        $region67: #{tpu_custom_call.1} parent=43 // pred_region
          %v562 = vld [vmem:[#allocation9] sm:$0xff]
          %v563 = vld [vmem:[#allocation9 + $0x8] sm:$0xff]
          %v564 = vld [vmem:[#allocation9 + $0x10] sm:$0xff]
          %v565 = vld [vmem:[#allocation9 + $0x18] sm:$0xff]
          %v566 = vld [vmem:[#allocation9 + $0x20] sm:$0xff]
          %v567 = vld [vmem:[#allocation9 + $0x28] sm:$0xff]
          %v568 = vld [vmem:[#allocation9 + $0x30] sm:$0xff]
          %v569 = vld [vmem:[#allocation9 + $0x38] sm:$0xff]
          %v570 = vld [vmem:[#allocation9 + $0x40] sm:$0xff]
          %v571 = vld [vmem:[#allocation9 + $0x48] sm:$0xff]
          %v572 = vld [vmem:[#allocation9 + $0x50] sm:$0xff]
          %v573 = vld [vmem:[#allocation9 + $0x58] sm:$0xff]
          %v574 = vld [vmem:[#allocation9 + $0x60] sm:$0xff]
          %v575 = vld [vmem:[#allocation9 + $0x68] sm:$0xff]
          %v576 = vld [vmem:[#allocation9 + $0x70] sm:$0xff]
          %v577 = vld [vmem:[#allocation9 + $0x78] sm:$0xff]
          %v578 = vld [vmem:[%s5] sm:$0x1]
          %v580 = vlaneseq
          %v581 = vshrl.u32 %v580, 7
          %v582 = vsub.s32 0, %v581
          %v583 = vrot.slane %v578, %v582
          %585 = vmatprep.subr.mxu0 0.0
          %586 = vmatpush1.msra.mxu0 %v562
          %587 = vmatprep.subr.mxu0 0.0
          %588 = vmatpush1.msra.mxu0 %v563
          %589 = vmatprep.subr.mxu0 0.0
          %590 = vmatpush1.msra.mxu0 %v564
          %591 = vmatprep.subr.mxu0 0.0
          %592 = vmatpush1.msra.mxu0 %v565
          %593 = vmatprep.subr.mxu0 0.0
          %594 = vmatpush1.msra.mxu0 %v566
          %595 = vmatprep.subr.mxu0 0.0
          %596 = vmatpush1.msra.mxu0 %v567
          %597 = vmatprep.subr.mxu0 0.0
          %598 = vmatpush1.msra.mxu0 %v568
          %599 = vmatprep.subr.mxu0 0.0
          %600 = vmatpush1.msra.mxu0 %v569
          %601 = vmatprep.subr.mxu0 0.0
          %602 = vmatpush1.msra.mxu0 %v570
          %603 = vmatprep.subr.mxu0 0.0
          %604 = vmatpush1.msra.mxu0 %v571
          %605 = vmatprep.subr.mxu0 0.0
          %606 = vmatpush1.msra.mxu0 %v572
          %607 = vmatprep.subr.mxu0 0.0
          %608 = vmatpush1.msra.mxu0 %v573
          %609 = vmatprep.subr.mxu0 0.0
          %610 = vmatpush1.msra.mxu0 %v574
          %611 = vmatprep.subr.mxu0 0.0
          %612 = vmatpush1.msra.mxu0 %v575
          %613 = vmatprep.subr.mxu0 0.0
          %614 = vmatpush1.msra.mxu0 %v576
          %615 = vmatprep.subr.mxu0 0.0
          %616 = vmatpush1.msra.mxu0 %v577
          %617 = vmatprep.subr.mxu0 0.0
          %618 = vmatpush1.msra.mxu0 0.0
          %619 = vmatprep.subr.mxu0 0.0
          %620 = vmatpush1.msra.mxu0 0.0
          %621 = vmatprep.subr.mxu0 0.0
          %622 = vmatpush1.msra.mxu0 0.0
          %623 = vmatprep.subr.mxu0 0.0
          %624 = vmatpush1.msra.mxu0 0.0
          %625 = vmatprep.subr.mxu0 0.0
          %626 = vmatpush1.msra.mxu0 0.0
          %627 = vmatprep.subr.mxu0 0.0
          %628 = vmatpush1.msra.mxu0 0.0
          %629 = vmatprep.subr.mxu0 0.0
          %630 = vmatpush1.msra.mxu0 0.0
          %631 = vmatprep.subr.mxu0 0.0
          %632 = vmatpush1.msra.mxu0 0.0
          %633 = vmatprep.subr.mxu0 0.0
          %634 = vmatpush1.msra.mxu0 0.0
          %635 = vmatprep.subr.mxu0 0.0
          %636 = vmatpush1.msra.mxu0 0.0
          %637 = vmatprep.subr.mxu0 0.0
          %638 = vmatpush1.msra.mxu0 0.0
          %639 = vmatprep.subr.mxu0 0.0
          %640 = vmatpush1.msra.mxu0 0.0
          %641 = vmatprep.subr.mxu0 0.0
          %642 = vmatpush1.msra.mxu0 0.0
          %643 = vmatprep.subr.mxu0 0.0
          %644 = vmatpush1.msra.mxu0 0.0
          %645 = vmatprep.subr.mxu0 0.0
          %646 = vmatpush1.msra.mxu0 0.0
          %647 = vmatprep.subr.mxu0 0.0
          %648 = vmatpush1.msra.mxu0 0.0
          %649 = vmatprep.mubr.f32.mxu0 0.0
          %650 = vmatmul.mubr.f32.gmra.mrb[0].mxu0 %v556
          %v651 = vpop.f32.mrb[0].mxu0
          %v652 = vadd.f32 %v583, %v651
          %v653 = vpop.f32.mrb[0].mxu0
          %654 = vdwg.mxu0
          %655 = vst [vmem:[#allocation11] sm:$0xff] %v652
        $region68: #{tpu_custom_call.1} parent=43 // pred_fallthru
          _
        // Predicated region
        $region69: #{tpu_custom_call.1} parent=43 // pred_check
          %p656 = pneg %p199
        $region70: #{tpu_custom_call.1} parent=43 // pred_check_branch
          %658 = sbr.rel (%p656) target = $region72
        $region71: #{tpu_custom_call.1} parent=43 // pred_region
          %s660 = ssub.s32 128, 128
          %661 = vsyncadd [#allocation5], %s660
          %s662 = smul.addr %s27, 128
          %s663 = scalar_lea.hbm %s6, %s662
          %s665 = sshll.u32 [#allocation11], 4
          %s666 = int_to_ptr.vmem [resolvable:$true] %s665
          %668 = dma.vmem_to_hbm [thread:$0]  %s666, 128, %s663, [#allocation5]
        $region72: #{tpu_custom_call.1} parent=43 // pred_fallthru
          _
        // Predicated region
        $region73: #{tpu_custom_call.1} parent=43 // pred_check
          %p669 = pneg %p199
        $region74: #{tpu_custom_call.1} parent=43 // pred_check_branch
          %671 = sbr.rel (%p669) target = $region76
        $region75: #{tpu_custom_call.1} parent=43 // pred_region
          %672 = dma.done [#allocation5], 128
        $region76: #{tpu_custom_call.1} parent=43 // pred_fallthru
          _
      $region44: #{tpu_custom_call.1} parent=5 // pred_fallthru
        _
      %p673 = scmp.le.s32.totalorder 2, %s18
      // Predicated region
      $region77: #{tpu_custom_call.1} parent=5 // pred_check
        %p674 = pneg %p673
      $region78: #{tpu_custom_call.1} parent=5 // pred_check_branch
        %676 = sbr.rel (%p674) target = $region80
      $region79: #{tpu_custom_call.1} parent=5 // pred_region
        %s677 = ssub.s32 %s18, 2
      $region80: #{tpu_custom_call.1} parent=5 // pred_fallthru
        _
    $region6: #{tpu_custom_call.1} parent=1 // loop_footer
      %s22 = sadd.s32 1, %s18
    $region7: #{tpu_custom_call.1} parent=1 // loop_footer_branch
      %17 = sbr.rel target = $region3
    $region8: #{tpu_custom_call.1} parent=1 // loop_exit
      _
    %678 = vsyncpa [#allocation4], 1
    %s679 = scalar_lea.sflag [#allocation4], 1
    %680 = vsyncpa %s679, 1
    %681 = vsyncpa [#allocation7], 1
    %s682 = scalar_lea.sflag [#allocation7], 1
    %683 = vsyncpa %s682, 1
    %684 = vsyncpa [#allocation10], 1
    %685 = vsyncpa [#allocation5], 1
    %s686 = scalar_lea.sflag [#allocation5], 1
    %687 = vsyncpa %s686, 1

</llo_original>
